<compile_context>
chip_gen: v5e
topology: v5e:2x2
jax: 0.10.0
libtpu: 0.0.40
codegen_flags: <defaults>
</compile_context>

<pallas_src>
import functools

import jax
import jax.numpy as jnp
from jax.experimental import pallas as pl
from jax.experimental.pallas import tpu as pltpu


LANE = 128      # TPU lane width (last-dim tiling unit)
SUBLANE = 8     # f32 sublane tiling unit
ROW_TILE = 512  # row tile for large tables (tiny VMEM footprint w/ 2x buffering)


def _round_up(n, m):
    return ((n + m - 1) // m) * m


def _encoder_kernel(x_ref, w_ref, b_ref, o_ref):
    # x_ref: (TM, Dp) bf16 row tile, w_ref: (Dp, Dp) bf16 = padded W_enc^T,
    # b_ref: (1, Dp) f32 bias row.  y = x @ w + b; MXU accumulates in f32,
    # bias add on the VPU, lane-dense f32 store.
    y = jnp.dot(x_ref[...], w_ref[...], preferred_element_type=jnp.float32)
    o_ref[...] = (y + b_ref[...]).astype(o_ref.dtype)


@functools.partial(jax.jit, static_argnames=("tm",))
def fused_linear_encode(x_pad, w_t_pad, b_row_pad, *, tm):
    """y = x_pad @ w_t_pad + b_row_pad over a row-tiled, parallel grid.

    x_pad: (Mp, Dp) bf16 with Mp % tm == 0 and Dp % 128 == 0,
    w_t_pad: (Dp, Dp) bf16, b_row_pad: (1, Dp) f32.  Returns (Mp, Dp) f32.
    """
    Mp, Dp = x_pad.shape
    return pl.pallas_call(
        _encoder_kernel,
        out_shape=jax.ShapeDtypeStruct((Mp, Dp), jnp.float32),
        grid=(Mp // tm,),
        in_specs=[
            pl.BlockSpec((tm, Dp), lambda i: (i, 0)),   # row tile of fused table
            pl.BlockSpec((Dp, Dp), lambda i: (0, 0)),   # resident W_enc^T
            pl.BlockSpec((1, Dp), lambda i: (0, 0)),    # resident bias row
        ],
        out_specs=pl.BlockSpec((tm, Dp), lambda i: (i, 0)),
        compiler_params=pltpu.CompilerParams(
            dimension_semantics=("parallel",),          # megacore shard on v7x
            vmem_limit_bytes=32 * 1024 * 1024,          # safe on v7x 64 MiB VMEM
        ),
    )(x_pad, w_t_pad, b_row_pad)


class GraphMAEPallas:
    """JAX/Pallas port of GraphMAE (forward pass only).

    The nn.Bilinear decoder parameters are created for module-shape parity but
    are unused in forward(), matching the PyTorch module.
    """

    def __init__(self, num_users, num_items, embed_dim, key):
        k_ue, k_ie, k_ew, k_eb, k_dw, k_db = jax.random.split(key, 6)
        self.num_users = num_users
        self.num_items = num_items
        self.embed_dim = embed_dim

        # Reference (PyTorch-layout) parameters, kept in f32.
        self.user_emb = jax.random.normal(k_ue, (num_users, embed_dim), jnp.float32)
        self.item_emb = jax.random.normal(k_ie, (num_items, embed_dim), jnp.float32)
        lim = 1.0 / float(embed_dim) ** 0.5
        self.enc_w = jax.random.uniform(
            k_ew, (embed_dim, embed_dim), jnp.float32, -lim, lim)
        self.enc_b = jax.random.uniform(
            k_eb, (embed_dim,), jnp.float32, -lim, lim)
        # nn.Bilinear(embed_dim, embed_dim, 1): unused in forward().
        self.dec_w = jax.random.uniform(
            k_dw, (1, embed_dim, embed_dim), jnp.float32, -lim, lim)
        self.dec_b = jax.random.uniform(k_db, (1,), jnp.float32, -lim, lim)

        # --- precompute fused + padded + bf16 kernel operands (done once) ----
        D = embed_dim
        Dp = _round_up(D, LANE)                    # lane-dense output width
        M = num_users + num_items                  # fused row count
        tm = min(ROW_TILE, _round_up(M, SUBLANE))  # row tile (full slab if small)
        Mp = _round_up(M, tm)

        x_all = jnp.concatenate([self.user_emb, self.item_emb], axis=0)
        self._x_pad = (
            jnp.zeros((Mp, Dp), jnp.bfloat16)
            .at[:M, :D].set(x_all.astype(jnp.bfloat16))
        )
        self._w_t_pad = (
            jnp.zeros((Dp, Dp), jnp.bfloat16)
            .at[:D, :D].set(self.enc_w.T.astype(jnp.bfloat16))
        )
        self._b_row_pad = (
            jnp.zeros((1, Dp), jnp.float32).at[:, :D].set(self.enc_b.reshape(1, D))
        )
        self._tm = tm

    def forward(self):
        # Single fused pallas_call over users+items; slice the two tables and
        # the lane padding off in the wrapper.
        y = fused_linear_encode(
            self._x_pad, self._w_t_pad, self._b_row_pad, tm=self._tm)
        D, U, I = self.embed_dim, self.num_users, self.num_items
        encoded_users = y[:U, :D]
        encoded_items = y[U:U + I, :D]
        return encoded_users, encoded_items

    # TODO(synk): random_edge_dropout / reconstruction_loss /
    # generate_denoised_adj operate on sparse adjacency tensors and are not
    # part of forward(); not ported.


if __name__ == "__main__":
    num_users, num_items, embed_dim = 16, 24, 32
    key = jax.random.PRNGKey(0)
    model = GraphMAEPallas(num_users, num_items, embed_dim, key)

    enc_u, enc_i = model.forward()
    enc_u, enc_i = jax.block_until_ready((enc_u, enc_i))

    # Correctness check: same bf16-rounded HBM operands, exact f32 matmul ref.
    xu = model.user_emb.astype(jnp.bfloat16).astype(jnp.float32)
    xi = model.item_emb.astype(jnp.bfloat16).astype(jnp.float32)
    w = model.enc_w.astype(jnp.bfloat16).astype(jnp.float32)
    ref_u = jnp.dot(xu, w.T, precision=jax.lax.Precision.HIGHEST) + model.enc_b
    ref_i = jnp.dot(xi, w.T, precision=jax.lax.Precision.HIGHEST) + model.enc_b

    assert enc_u.shape == (num_users, embed_dim)
    assert enc_i.shape == (num_items, embed_dim)
    assert jnp.allclose(enc_u, ref_u, atol=1e-4, rtol=1e-4)
    assert jnp.allclose(enc_i, ref_i, atol=1e-4, rtol=1e-4)

    print("KERNEL_OK")
</pallas_src>

<mosaic_0001>
module attributes {stable_mosaic.version = 11 : i64} {
  func.func @_encoder_kernel(%arg0: i32, %arg1: memref<40x128xbf16, #tpu.memory_space<vmem>>, %arg2: memref<128x128xbf16, #tpu.memory_space<vmem>>, %arg3: memref<1x128xf32, #tpu.memory_space<vmem>>, %arg4: memref<40x128xf32, #tpu.memory_space<vmem>>) attributes {dimension_semantics = [#tpu.dimension_semantics<parallel>], iteration_bounds = array<i64: 1>, scalar_prefetch = 0 : i64, scratch_operands = 0 : i64, tpu.core_type = #tpu.core_type<tc>, window_params = [{transform_indices = @transform_0, window_bounds = array<i64: 40, 128>}, {pipeline_mode = #tpu.pipeline_mode<synchronous>, transform_indices = @transform_1, window_bounds = array<i64: 128, 128>}, {pipeline_mode = #tpu.pipeline_mode<synchronous>, transform_indices = @transform_2, window_bounds = array<i64: 1, 128>}, {transform_indices = @transform_3, window_bounds = array<i64: 40, 128>}]} {
    %c0 = arith.constant 0 : index
    %c0_0 = arith.constant 0 : index
    %0 = vector.load %arg1[%c0, %c0_0] : memref<40x128xbf16, #tpu.memory_space<vmem>>, vector<40x128xbf16>
    %c0_1 = arith.constant 0 : index
    %c0_2 = arith.constant 0 : index
    %1 = vector.load %arg2[%c0_1, %c0_2] : memref<128x128xbf16, #tpu.memory_space<vmem>>, vector<128x128xbf16>
    %cst = arith.constant dense<0.000000e+00> : vector<40x128xf32>
    %2 = tpu.matmul %0, %1, %cst {dimension_numbers = #tpu.dot_dimension_numbers<[1], [0], [0], [1], [0, 0, 1, 1], [], []>} : vector<40x128xbf16>, vector<128x128xbf16>, vector<40x128xf32> -> vector<40x128xf32>
    %c0_3 = arith.constant 0 : index
    %c0_4 = arith.constant 0 : index
    %3 = vector.load %arg3[%c0_3, %c0_4] : memref<1x128xf32, #tpu.memory_space<vmem>>, vector<1x128xf32>
    %4 = vector.broadcast %3 : vector<1x128xf32> to vector<40x128xf32>
    %5 = arith.addf %2, %4 : vector<40x128xf32>
    %c0_5 = arith.constant 0 : index
    %c0_6 = arith.constant 0 : index
    %6 = vector.load %arg4[%c0_5, %c0_6] : memref<40x128xf32, #tpu.memory_space<vmem>>, vector<40x128xf32>
    tpu.vector_store %arg4[%c0_5, %c0_6], %5 {strides = array<i32>} : memref<40x128xf32, #tpu.memory_space<vmem>>, vector<40x128xf32>,
    return
  }
  func.func @transform_0(%arg0: i32) -> (i32, i32) {
    %c0_i32 = arith.constant 0 : i32
    %c0_i32_0 = arith.constant 0 : i32
    return %arg0, %c0_i32 : i32, i32
  }
  func.func @transform_1(%arg0: i32) -> (i32, i32) {
    %c0_i32 = arith.constant 0 : i32
    %c0_i32_0 = arith.constant 0 : i32
    %c0_i32_1 = arith.constant 0 : i32
    return %c0_i32, %c0_i32_0 : i32, i32
  }
  func.func @transform_2(%arg0: i32) -> (i32, i32) {
    %c0_i32 = arith.constant 0 : i32
    %c0_i32_0 = arith.constant 0 : i32
    %c0_i32_1 = arith.constant 0 : i32
    return %c0_i32, %c0_i32_0 : i32, i32
  }
  func.func @transform_3(%arg0: i32) -> (i32, i32) {
    %c0_i32 = arith.constant 0 : i32
    %c0_i32_0 = arith.constant 0 : i32
    return %arg0, %c0_i32 : i32, i32
  }
}

</mosaic_0001>

<llo_original>
// kernel: fused_linear_encode.1
$region0: #{fused_linear_encode.1}
  #allocation0 [shape = 'u32[]', space=smem, size = 0x4, offset = 0x4, fixed_abs, tag = 'smem constant byte address 0x4 - core index']
  #allocation1 [shape = 'u32[72,128]{1,0:T(1,128)}', space=vmem, size = 0x9000, scoped, tag = 'internal scratch']
  %s0 = inlined_call_operand.hbm [shape: bf16[40,128], index: 0, kind: input, shape index: {}]
  %s1 = inlined_call_operand.hbm [shape: bf16[128,128], index: 1, kind: input, shape index: {}]
  %s2 = inlined_call_operand.vmem [shape: f32[1,128], index: 2, kind: input, shape index: {}]
  %s3 = inlined_call_operand.hbm [shape: f32[40,128], index: 3, kind: output, shape index: {}]
  %s4 = sld [smem:[#allocation0]]
  $region30: #{fused_linear_encode.1} parent=0
    _
  %s6 = ssub.s32 1, %s4
  %s7 = scalar_select 0, %s6, %s4
  $region1: #{fused_linear_encode.1} parent=0
    #allocation2 [shape = 'u8[10240]{0}', space=vmem, size = 0x2800, scoped, tag = 'input window, operand 0, single buffered']
    #allocation3 [shape = 's32[1]{0}', space=sflag, size = 0x4, scoped, tag = 'scoped memory for fused_linear_encode.1']
    #allocation4 [shape = 's32[1]{0}', space=sflag, size = 0x4, scoped, tag = 'scoped memory for fused_linear_encode.1']
    #allocation5 [shape = 'u8[32768]{0}', space=vmem, size = 0x8000, scoped, tag = 'input window, operand 1, single buffered']
    #allocation6 [shape = 's32[1]{0}', space=sflag, size = 0x4, scoped, tag = 'scoped memory for fused_linear_encode.1']
    #allocation7 [shape = 'u8[20480]{0}', space=vmem, size = 0x5000, scoped, tag = 'output window, operand 0, single buffered']
    %8 = vsyncpa [#allocation3], 0
    %9 = vsyncpa [#allocation6], 0
    %10 = vsyncpa [#allocation4], 0
    // Predicated region
    $region2: #{fused_linear_encode.1} parent=1 // pred_check
      _
    $region3: #{fused_linear_encode.1} parent=1 // pred_check_branch
      %12 = sbr.rel (0) target = $region5
    $region4: #{fused_linear_encode.1} parent=1 // pred_region
      %14 = vsyncadd [#allocation3], 0
      %s15 = sshll.u32 %s0, 4
      %s16 = int_to_ptr.hbm [resolvable:$true] %s15
      %s17 = sshll.u32 [#allocation2], 4
      %s18 = int_to_ptr.vmem [resolvable:$true] %s17
      %23 = dma.hbm_to_vmem [thread:$0]  %s16, 320, %s18, [#allocation3], 64, 64, 4
    $region5: #{fused_linear_encode.1} parent=1 // pred_fallthru
      _
    // Predicated region
    $region6: #{fused_linear_encode.1} parent=1 // pred_check
      _
    $region7: #{fused_linear_encode.1} parent=1 // pred_check_branch
      %25 = sbr.rel (0) target = $region9
    $region8: #{fused_linear_encode.1} parent=1 // pred_region
      %27 = vsyncadd [#allocation6], 0
      %s28 = sshll.u32 %s1, 4
      %s29 = int_to_ptr.hbm [resolvable:$true] %s28
      %s30 = sshll.u32 [#allocation5], 4
      %s31 = int_to_ptr.vmem [resolvable:$true] %s30
      %36 = dma.hbm_to_vmem [thread:$0]  %s29, 1024, %s31, [#allocation6], 64, 64, 4
    $region9: #{fused_linear_encode.1} parent=1 // pred_fallthru
      _
    // Predicated region
    $region10: #{fused_linear_encode.1} parent=1 // pred_check
      _
    $region11: #{fused_linear_encode.1} parent=1 // pred_check_branch
      %38 = sbr.rel (0) target = $region13
    $region12: #{fused_linear_encode.1} parent=1 // pred_region
      _
    $region13: #{fused_linear_encode.1} parent=1 // pred_fallthru
      _
    // Predicated region
    $region14: #{fused_linear_encode.1} parent=1 // pred_check
      _
    $region15: #{fused_linear_encode.1} parent=1 // pred_check_branch
      %40 = sbr.rel (0) target = $region17
    $region16: #{fused_linear_encode.1} parent=1 // pred_region
      %42 = dma.done [#allocation3], 320
    $region17: #{fused_linear_encode.1} parent=1 // pred_fallthru
      _
    // Predicated region
    $region18: #{fused_linear_encode.1} parent=1 // pred_check
      _
    $region19: #{fused_linear_encode.1} parent=1 // pred_check_branch
      %44 = sbr.rel (0) target = $region21
    $region20: #{fused_linear_encode.1} parent=1 // pred_region
      %46 = dma.done [#allocation6], 1024
    $region21: #{fused_linear_encode.1} parent=1 // pred_fallthru
      _
    %v47 = vld [vmem:[#allocation2] sm:$0xf]
    %v48 = vld [vmem:[#allocation2 + $0x4] sm:$0xf]
    %v49 = vld [vmem:[#allocation2 + $0x8] sm:$0xf]
    %v50 = vld [vmem:[#allocation2 + $0xc] sm:$0xf]
    %v51 = vld [vmem:[#allocation2 + $0x10] sm:$0xf]
    %v52 = vld [vmem:[#allocation5] sm:$0xf]
    %v53 = vld [vmem:[#allocation5 + $0x4] sm:$0xf]
    %v54 = vld [vmem:[#allocation5 + $0x8] sm:$0xf]
    %v55 = vld [vmem:[#allocation5 + $0xc] sm:$0xf]
    %v56 = vld [vmem:[#allocation5 + $0x10] sm:$0xf]
    %v57 = vld [vmem:[#allocation5 + $0x14] sm:$0xf]
    %v58 = vld [vmem:[#allocation5 + $0x18] sm:$0xf]
    %v59 = vld [vmem:[#allocation5 + $0x1c] sm:$0xf]
    %v60 = vld [vmem:[#allocation5 + $0x20] sm:$0xf]
    %v61 = vld [vmem:[#allocation5 + $0x24] sm:$0xf]
    %v62 = vld [vmem:[#allocation5 + $0x28] sm:$0xf]
    %v63 = vld [vmem:[#allocation5 + $0x2c] sm:$0xf]
    %v64 = vld [vmem:[#allocation5 + $0x30] sm:$0xf]
    %v65 = vld [vmem:[#allocation5 + $0x34] sm:$0xf]
    %v66 = vld [vmem:[#allocation5 + $0x38] sm:$0xf]
    %v67 = vld [vmem:[#allocation5 + $0x3c] sm:$0xf]
    %v68 = vld [vmem:[%s2] sm:$0x1]
    %v70 = vperm.slane %v68, 0
    %v77 = vunpack.c.l.b16 %v47
    %v78 = vunpack.c.l.b16 %v48
    %v79 = vunpack.c.l.b16 %v49
    %v80 = vunpack.c.l.b16 %v50
    %v81 = vunpack.c.l.b16 %v51
    %v82 = vpack.c.b16 %v78, %v77
    %v83 = vpack.c.b16 %v80, %v79
    %v84 = vpack.c.b16 %v81, %v81
    %v104 = vunpack.c.l.b16 %v52
    %v105 = vunpack.c.l.b16 %v53
    %v106 = vunpack.c.l.b16 %v54
    %v107 = vunpack.c.l.b16 %v55
    %v108 = vunpack.c.l.b16 %v56
    %v109 = vunpack.c.l.b16 %v57
    %v110 = vunpack.c.l.b16 %v58
    %v111 = vunpack.c.l.b16 %v59
    %v112 = vunpack.c.l.b16 %v60
    %v113 = vunpack.c.l.b16 %v61
    %v114 = vunpack.c.l.b16 %v62
    %v115 = vunpack.c.l.b16 %v63
    %v116 = vunpack.c.l.b16 %v64
    %v117 = vunpack.c.l.b16 %v65
    %v118 = vunpack.c.l.b16 %v66
    %v119 = vunpack.c.l.b16 %v67
    %v120 = vpack.c.b16 %v105, %v104
    %v121 = vpack.c.b16 %v107, %v106
    %v122 = vpack.c.b16 %v109, %v108
    %v123 = vpack.c.b16 %v111, %v110
    %v124 = vpack.c.b16 %v113, %v112
    %v125 = vpack.c.b16 %v115, %v114
    %v126 = vpack.c.b16 %v117, %v116
    %v127 = vpack.c.b16 %v119, %v118
    %136 = vmatpush.bf16.msra.mxu0 %v127
    %137 = vmatpush.bf16.msra.mxu0 %v126
    %138 = vmatpush.bf16.msra.mxu0 %v125
    %139 = vmatpush.bf16.msra.mxu0 %v124
    %140 = vmatpush.bf16.msra.mxu0 %v123
    %141 = vmatpush.bf16.msra.mxu0 %v122
    %142 = vmatpush.bf16.msra.mxu0 %v121
    %143 = vmatpush.bf16.msra.mxu0 %v120
    %144 = vmatmul.bf16.gmra.mxu0 %v82
    %v145 = vpop.f32.mrf.mxu0
    %v146 = vadd.f32 %v70, %v145
    %v147 = vpop.f32.mrf.mxu0
    %v148 = vadd.f32 %v70, %v147
    %149 = vmatmul.bf16.gmra.mxu0 %v83
    %v150 = vpop.f32.mrf.mxu0
    %v151 = vadd.f32 %v70, %v150
    %v152 = vpop.f32.mrf.mxu0
    %v153 = vadd.f32 %v70, %v152
    %154 = vmatmul.bf16.gmra.mxu0 %v84
    %v155 = vpop.f32.mrf.mxu0
    %v156 = vadd.f32 %v70, %v155
    %v157 = vpop.f32.mrf.mxu0
    %158 = vdwg.mxu0
    %159 = vst [vmem:[#allocation7] sm:$0xff] %v146
    %160 = vst [vmem:[#allocation7 + $0x8] sm:$0xff] %v148
    %161 = vst [vmem:[#allocation7 + $0x10] sm:$0xff] %v151
    %162 = vst [vmem:[#allocation7 + $0x18] sm:$0xff] %v153
    %163 = vst [vmem:[#allocation7 + $0x20] sm:$0xff] %v156
    // Predicated region
    $region22: #{fused_linear_encode.1} parent=1 // pred_check
      _
    $region23: #{fused_linear_encode.1} parent=1 // pred_check_branch
      %165 = sbr.rel (0) target = $region25
    $region24: #{fused_linear_encode.1} parent=1 // pred_region
      %167 = vsyncadd [#allocation4], 0
      %s168 = sshll.u32 [#allocation7], 4
      %s169 = int_to_ptr.vmem [resolvable:$true] %s168
      %s170 = sshll.u32 %s3, 4
      %s171 = int_to_ptr.hbm [resolvable:$true] %s170
      %176 = dma.vmem_to_hbm [thread:$0]  %s169, 640, %s171, [#allocation4], 128, 128, 8
    $region25: #{fused_linear_encode.1} parent=1 // pred_fallthru
      _
    // Predicated region
    $region26: #{fused_linear_encode.1} parent=1 // pred_check
      _
    $region27: #{fused_linear_encode.1} parent=1 // pred_check_branch
      %178 = sbr.rel (0) target = $region29
    $region28: #{fused_linear_encode.1} parent=1 // pred_region
      %180 = dma.done [#allocation4], 640
    $region29: #{fused_linear_encode.1} parent=1 // pred_fallthru
      _
    %181 = vsyncpa [#allocation3], 1
    %182 = vsyncpa [#allocation6], 1
    %183 = vsyncpa [#allocation4], 1

</llo_original>
